<compile_context>
chip_gen: v6e
topology: v6e:2x2x1
jax: 0.10.0
libtpu: 0.0.40
codegen_flags: <defaults>
</compile_context>

<pallas_src>
import functools

import jax
import jax.numpy as jnp
from jax.experimental import pallas as pl
from jax.experimental.pallas import tpu as pltpu

D_IN, D_HID, D_OUT = 50, 200, 400   # true ObjectDecoder dims
H_PAD = 256                         # hidden padded to a lane multiple (200 -> 256)


def _round_up(x, m):
    return ((x + m - 1) // m) * m


def _cdiv(a, b):
    return (a + b - 1) // b


def _object_decoder_kernel(x_ref, w1_ref, b1_ref, w2_ref, b2_ref, out_ref):
    # Fused hot path: matmul -> +bias -> ReLU -> matmul -> +bias -> sigmoid.
    x = x_ref[...].astype(w1_ref.dtype)                               # [TM, 50] cast in-kernel
    h = jnp.dot(x, w1_ref[...],
                preferred_element_type=jnp.float32) + b1_ref[...]     # [TM, 256] f32
    h = jnp.maximum(h, 0.0).astype(w2_ref.dtype)                      # ReLU, back to MXU dtype
    y = jnp.dot(h, w2_ref[...],
                preferred_element_type=jnp.float32) + b2_ref[...]     # [TM, 400] f32
    # sigmoid(y) = 1 / (1 + exp(-y)); exp + approx reciprocal both use the EUP slot.
    denom = 1.0 + jnp.exp(-y)
    out_ref[...] = pl.reciprocal(denom, approx=True).astype(out_ref.dtype)


def prepare_params(w1, b1, w2, b2, mm_dtype=jnp.bfloat16):
    """One-time (init-time) packing of weights for the kernel.

    Expects weights in [in, out] layout (transposed vs. torch nn.Linear.weight).
    Pads the hidden dim 200 -> 256 (zero pad: ReLU(0)=0 and the padded w2 rows are
    zero, so results are unchanged) and casts matmul operands to `mm_dtype`.
    """
    w1p = jnp.pad(w1, ((0, 0), (0, H_PAD - D_HID))).astype(mm_dtype)               # [50, 256]
    b1p = jnp.pad(b1.reshape(1, -1), ((0, 0), (0, H_PAD - D_HID))).astype(jnp.float32)  # [1, 256]
    w2p = jnp.pad(w2, ((0, H_PAD - D_HID), (0, 0))).astype(mm_dtype)               # [256, 400]
    b2p = b2.reshape(1, -1).astype(jnp.float32)                                    # [1, 400]
    return w1p, b1p, w2p, b2p


@functools.partial(jax.jit, static_argnames=("block_b",))
def object_decoder_forward(z_what, w1p, b1p, w2p, b2p, *, block_b=1024):
    """z_what: [B, 50] f32; (w1p, b1p, w2p, b2p) from prepare_params().
       Returns sigmoid(relu(z_what @ w1 + b1) @ w2 + b2): [B, 400] f32.
       block_b: max batch tile (use 2048 on v6e/v7x for very large B)."""
    assert block_b % 8 == 0, "block_b must be a multiple of 8 (sublane tiling)"
    B = z_what.shape[0]

    # Batch tile: as large as block_b allows (amortizes the ~0.35us/step pipeline
    # overhead on this HBM-bound kernel) but capped so the grid has >=2 steps when
    # B is big enough -- otherwise one v7x TensorCore would sit idle.
    TM = min(block_b, max(8, _round_up(_cdiv(B, 2), 8)))
    Bp = _round_up(B, TM)

    # Only the batch dim is ever padded, and only when B % TM != 0.
    xp = z_what if Bp == B else jnp.pad(z_what, ((0, Bp - B), (0, 0)))

    cost = pl.CostEstimate(
        flops=2 * B * (D_IN * D_HID + D_HID * D_OUT),
        transcendentals=2 * B * D_OUT,                      # exp + approx reciprocal
        bytes_accessed=(xp.size * xp.dtype.itemsize
                        + w1p.size * w1p.dtype.itemsize
                        + w2p.size * w2p.dtype.itemsize
                        + b1p.size * 4 + b2p.size * 4
                        + Bp * D_OUT * 4),
    )

    out = pl.pallas_call(
        _object_decoder_kernel,
        out_shape=jax.ShapeDtypeStruct((Bp, D_OUT), jnp.float32),
        grid=(Bp // TM,),
        in_specs=[
            pl.BlockSpec((TM, D_IN), lambda i: (i, 0)),     # x tile: streamed, f32, K=50
            pl.BlockSpec((D_IN, H_PAD), lambda i: (0, 0)),  # weights: VMEM-resident
            pl.BlockSpec((1, H_PAD), lambda i: (0, 0)),
            pl.BlockSpec((H_PAD, D_OUT), lambda i: (0, 0)),
            pl.BlockSpec((1, D_OUT), lambda i: (0, 0)),
        ],
        out_specs=pl.BlockSpec((TM, D_OUT), lambda i: (i, 0)),  # true 400-wide output
        compiler_params=pltpu.CompilerParams(
            dimension_semantics=("parallel",),              # megacore split on v7x
            vmem_limit_bytes=32 * 1024 * 1024,              # headroom for TM up to 2048
        ),
        cost_estimate=cost,
    )(xp, w1p, b1p, w2p, b2p)

    # Only strip the batch pad (no column slice -- kernel already writes 400 wide).
    return out if Bp == B else out[:B]


def init_params(key):
    """Deterministic synthetic init (uniform fan-in scaling like torch Linear),
       weights in [in, out] layout."""
    k1, k2, k3, k4 = jax.random.split(key, 4)
    bound1 = 1.0 / (D_IN ** 0.5)
    bound2 = 1.0 / (D_HID ** 0.5)
    w1 = jax.random.uniform(k1, (D_IN, D_HID), jnp.float32, -bound1, bound1)
    b1 = jax.random.uniform(k2, (D_HID,), jnp.float32, -bound1, bound1)
    w2 = jax.random.uniform(k3, (D_HID, D_OUT), jnp.float32, -bound2, bound2)
    b2 = jax.random.uniform(k4, (D_OUT,), jnp.float32, -bound2, bound2)
    return w1, b1, w2, b2


if __name__ == "__main__":
    key = jax.random.PRNGKey(0)
    k_data, k_params = jax.random.split(key)

    B = 8
    z_what = jax.random.normal(k_data, (B, D_IN), jnp.float32)
    w1, b1, w2, b2 = init_params(k_params)

    # One-time weight packing (pad hidden 200->256, cast to bf16).
    w1p, b1p, w2p, b2p = prepare_params(w1, b1, w2, b2)

    out = object_decoder_forward(z_what, w1p, b1p, w2p, b2p)
    jax.block_until_ready(out)

    # Correctness check vs. plain-JAX f32 reference (tolerance covers bf16 matmuls
    # + approx reciprocal; sigmoid outputs are in [0, 1]).
    h_ref = jnp.maximum(z_what @ w1 + b1, 0.0)
    y_ref = jax.nn.sigmoid(h_ref @ w2 + b2)
    assert out.shape == (B, D_OUT)
    assert jnp.allclose(out, y_ref, atol=2e-2), float(jnp.max(jnp.abs(out - y_ref)))

    print("KERNEL_OK")
</pallas_src>

<mosaic_0001>
module attributes {stable_mosaic.version = 11 : i64} {
  func.func @_object_decoder_kernel(%arg0: i32, %arg1: memref<8x50xf32, #tpu.memory_space<vmem>>, %arg2: memref<50x256xbf16, #tpu.memory_space<vmem>>, %arg3: memref<1x256xf32, #tpu.memory_space<vmem>>, %arg4: memref<256x400xbf16, #tpu.memory_space<vmem>>, %arg5: memref<1x400xf32, #tpu.memory_space<vmem>>, %arg6: memref<8x400xf32, #tpu.memory_space<vmem>>) attributes {dimension_semantics = [#tpu.dimension_semantics<parallel>], iteration_bounds = array<i64: 1>, scalar_prefetch = 0 : i64, scratch_operands = 0 : i64, tpu.core_type = #tpu.core_type<tc>, window_params = [{transform_indices = @transform_0, window_bounds = array<i64: 8, 50>}, {pipeline_mode = #tpu.pipeline_mode<synchronous>, transform_indices = @transform_1, window_bounds = array<i64: 50, 256>}, {pipeline_mode = #tpu.pipeline_mode<synchronous>, transform_indices = @transform_2, window_bounds = array<i64: 1, 256>}, {pipeline_mode = #tpu.pipeline_mode<synchronous>, transform_indices = @transform_3, window_bounds = array<i64: 256, 400>}, {pipeline_mode = #tpu.pipeline_mode<synchronous>, transform_indices = @transform_4, window_bounds = array<i64: 1, 400>}, {transform_indices = @transform_5, window_bounds = array<i64: 8, 400>}]} {
    %c0 = arith.constant 0 : index
    %c0_0 = arith.constant 0 : index
    %0 = vector.load %arg1[%c0, %c0_0] : memref<8x50xf32, #tpu.memory_space<vmem>>, vector<8x50xf32>
    %1 = arith.truncf %0 : vector<8x50xf32> to vector<8x50xbf16>
    %c0_1 = arith.constant 0 : index
    %c0_2 = arith.constant 0 : index
    %2 = vector.load %arg2[%c0_1, %c0_2] : memref<50x256xbf16, #tpu.memory_space<vmem>>, vector<50x256xbf16>
    %cst = arith.constant dense<0.000000e+00> : vector<8x256xf32>
    %3 = tpu.matmul %1, %2, %cst {dimension_numbers = #tpu.dot_dimension_numbers<[1], [0], [0], [1], [0, 0, 1, 1], [], []>} : vector<8x50xbf16>, vector<50x256xbf16>, vector<8x256xf32> -> vector<8x256xf32>
    %c0_3 = arith.constant 0 : index
    %c0_4 = arith.constant 0 : index
    %4 = vector.load %arg3[%c0_3, %c0_4] : memref<1x256xf32, #tpu.memory_space<vmem>>, vector<1x256xf32>
    %5 = vector.broadcast %4 : vector<1x256xf32> to vector<8x256xf32>
    %6 = arith.addf %3, %5 : vector<8x256xf32>
    %cst_5 = arith.constant 0.000000e+00 : f32
    %7 = vector.broadcast %cst_5 : f32 to vector<8x256xf32>
    %8 = arith.maximumf %6, %7 : vector<8x256xf32>
    %9 = arith.truncf %8 : vector<8x256xf32> to vector<8x256xbf16>
    %c0_6 = arith.constant 0 : index
    %c0_7 = arith.constant 0 : index
    %10 = vector.load %arg4[%c0_6, %c0_7] : memref<256x400xbf16, #tpu.memory_space<vmem>>, vector<256x400xbf16>
    %cst_8 = arith.constant dense<0.000000e+00> : vector<8x400xf32>
    %11 = tpu.matmul %9, %10, %cst_8 {dimension_numbers = #tpu.dot_dimension_numbers<[1], [0], [0], [1], [0, 0, 1, 1], [], []>} : vector<8x256xbf16>, vector<256x400xbf16>, vector<8x400xf32> -> vector<8x400xf32>
    %c0_9 = arith.constant 0 : index
    %c0_10 = arith.constant 0 : index
    %12 = vector.load %arg5[%c0_9, %c0_10] : memref<1x400xf32, #tpu.memory_space<vmem>>, vector<1x400xf32>
    %13 = vector.broadcast %12 : vector<1x400xf32> to vector<8x400xf32>
    %14 = arith.addf %11, %13 : vector<8x400xf32>
    %cst_11 = arith.constant 0.000000e+00 : f32
    %15 = vector.broadcast %cst_11 : f32 to vector<8x400xf32>
    %16 = arith.subf %15, %14 : vector<8x400xf32>
    %17 = math.exp %16 : vector<8x400xf32>
    %cst_12 = arith.constant 1.000000e+00 : f32
    %18 = vector.broadcast %cst_12 : f32 to vector<8x400xf32>
    %19 = arith.addf %18, %17 : vector<8x400xf32>
    %20 = tpu.reciprocal %19 {approx = true} : vector<8x400xf32> -> vector<8x400xf32>
    %c0_13 = arith.constant 0 : index
    %c0_14 = arith.constant 0 : index
    %21 = vector.load %arg6[%c0_13, %c0_14] : memref<8x400xf32, #tpu.memory_space<vmem>>, vector<8x400xf32>
    tpu.vector_store %arg6[%c0_13, %c0_14], %20 {strides = array<i32>} : memref<8x400xf32, #tpu.memory_space<vmem>>, vector<8x400xf32>,
    return
  }
  func.func @transform_0(%arg0: i32) -> (i32, i32) {
    %c0_i32 = arith.constant 0 : i32
    %c0_i32_0 = arith.constant 0 : i32
    return %arg0, %c0_i32 : i32, i32
  }
  func.func @transform_1(%arg0: i32) -> (i32, i32) {
    %c0_i32 = arith.constant 0 : i32
    %c0_i32_0 = arith.constant 0 : i32
    %c0_i32_1 = arith.constant 0 : i32
    return %c0_i32, %c0_i32_0 : i32, i32
  }
  func.func @transform_2(%arg0: i32) -> (i32, i32) {
    %c0_i32 = arith.constant 0 : i32
    %c0_i32_0 = arith.constant 0 : i32
    %c0_i32_1 = arith.constant 0 : i32
    return %c0_i32, %c0_i32_0 : i32, i32
  }
  func.func @transform_3(%arg0: i32) -> (i32, i32) {
    %c0_i32 = arith.constant 0 : i32
    %c0_i32_0 = arith.constant 0 : i32
    %c0_i32_1 = arith.constant 0 : i32
    return %c0_i32, %c0_i32_0 : i32, i32
  }
  func.func @transform_4(%arg0: i32) -> (i32, i32) {
    %c0_i32 = arith.constant 0 : i32
    %c0_i32_0 = arith.constant 0 : i32
    %c0_i32_1 = arith.constant 0 : i32
    return %c0_i32, %c0_i32_0 : i32, i32
  }
  func.func @transform_5(%arg0: i32) -> (i32, i32) {
    %c0_i32 = arith.constant 0 : i32
    %c0_i32_0 = arith.constant 0 : i32
    return %arg0, %c0_i32 : i32, i32
  }
}

</mosaic_0001>

<llo_original>
// kernel: object_decoder_forward.1
$region0: #{object_decoder_forward.1}
  #allocation0 [shape = 'u32[]', space=smem, size = 0x4, offset = 0x4, fixed_abs, tag = 'smem constant byte address 0x4 - core index']
  #allocation1 [shape = 'u32[144,128]{1,0:T(1,128)}', space=vmem, size = 0x12000, scoped, tag = 'internal scratch']
  %s0 = inlined_call_operand.vmem [shape: f32[8,50], index: 0, kind: input, shape index: {}]
  %s1 = inlined_call_operand.vmem [shape: bf16[50,256], index: 1, kind: input, shape index: {}]
  %s2 = inlined_call_operand.vmem [shape: f32[1,256], index: 2, kind: input, shape index: {}]
  %s3 = inlined_call_operand.vmem [shape: bf16[256,400], index: 3, kind: input, shape index: {}]
  %s4 = inlined_call_operand.vmem [shape: f32[1,400], index: 4, kind: input, shape index: {}]
  %s5 = inlined_call_operand.hbm [shape: f32[8,400], index: 5, kind: output, shape index: {}]
  %s6 = sld [smem:[#allocation0]]
  $region30: #{object_decoder_forward.1} parent=0
    _
  %s8 = ssub.s32 1, %s6
  %s9 = scalar_select 0, %s8, %s6
  $region1: #{object_decoder_forward.1} parent=0
    #allocation2 [shape = 'u8[16384]{0}', space=vmem, size = 0x4000, scoped, tag = 'output window, operand 0, single buffered']
    #allocation3 [shape = 's32[1]{0}', space=sflag, size = 0x4, scoped, tag = 'scoped memory for object_decoder_forward.1']
    %10 = vsyncpa [#allocation3], 0
    // Predicated region
    $region2: #{object_decoder_forward.1} parent=1 // pred_check
      _
    $region3: #{object_decoder_forward.1} parent=1 // pred_check_branch
      %12 = sbr.rel (0) target = $region5
    $region4: #{object_decoder_forward.1} parent=1 // pred_region
      _
    $region5: #{object_decoder_forward.1} parent=1 // pred_fallthru
      _
    // Predicated region
    $region6: #{object_decoder_forward.1} parent=1 // pred_check
      _
    $region7: #{object_decoder_forward.1} parent=1 // pred_check_branch
      %14 = sbr.rel (0) target = $region9
    $region8: #{object_decoder_forward.1} parent=1 // pred_region
      _
    $region9: #{object_decoder_forward.1} parent=1 // pred_fallthru
      _
    // Predicated region
    $region10: #{object_decoder_forward.1} parent=1 // pred_check
      _
    $region11: #{object_decoder_forward.1} parent=1 // pred_check_branch
      %16 = sbr.rel (0) target = $region13
    $region12: #{object_decoder_forward.1} parent=1 // pred_region
      _
    $region13: #{object_decoder_forward.1} parent=1 // pred_fallthru
      _
    // Predicated region
    $region14: #{object_decoder_forward.1} parent=1 // pred_check
      _
    $region15: #{object_decoder_forward.1} parent=1 // pred_check_branch
      %18 = sbr.rel (0) target = $region17
    $region16: #{object_decoder_forward.1} parent=1 // pred_region
      _
    $region17: #{object_decoder_forward.1} parent=1 // pred_fallthru
      _
    // Predicated region
    $region18: #{object_decoder_forward.1} parent=1 // pred_check
      _
    $region19: #{object_decoder_forward.1} parent=1 // pred_check_branch
      %20 = sbr.rel (0) target = $region21
    $region20: #{object_decoder_forward.1} parent=1 // pred_region
      _
    $region21: #{object_decoder_forward.1} parent=1 // pred_fallthru
      _
    %v22 = vld [vmem:[%s0] sm:$0xff]
    %v23 = vpack.c.bf16 %v22, %v22
    %v24 = vld [vmem:[%s1] sm:$0xff]
    %v25 = vld [vmem:[%s1 + $0x8] sm:$0xff]
    %v26 = vld [vmem:[%s1 + $0x10] sm:$0xff]
    %v27 = vld [vmem:[%s1 + $0x18] sm:$0xff]
    %v28 = vld [vmem:[%s1 + $0x20] sm:$0xff]
    %v29 = vld [vmem:[%s1 + $0x28] sm:$0xff]
    %v30 = vld [vmem:[%s1 + $0x30] sm:$0x11]
    %v31 = vld [vmem:[%s2] sm:$0x3]
    %v33 = vlaneseq
    %v34 = vshrl.u32 %v33, 7
    %v35 = vsub.s32 0, %v34
    %v36 = vrot.slane %v31, %v35
    %v37 = vlaneseq
    %v38 = vshrl.u32 %v37, 7
    %v39 = vsub.s32 1, %v38
    %v40 = vrot.slane %v31, %v39
    %v50 = vunpack.c.l.b16 %v24
    %v51 = vunpack.c.h.b16 %v24
    %v52 = vunpack.c.l.b16 %v25
    %v53 = vunpack.c.h.b16 %v25
    %v54 = vunpack.c.l.b16 %v26
    %v55 = vunpack.c.h.b16 %v26
    %v56 = vunpack.c.l.b16 %v27
    %v57 = vunpack.c.h.b16 %v27
    %v58 = vunpack.c.l.b16 %v28
    %v59 = vunpack.c.h.b16 %v28
    %v60 = vunpack.c.l.b16 %v29
    %v61 = vunpack.c.h.b16 %v29
    %v62 = vunpack.c.l.b16 %v30
    %v63 = vunpack.c.h.b16 %v30
    %v64 = vpack.c.b16 %v52, %v50
    %v65 = vpack.c.b16 %v53, %v51
    %v66 = vpack.c.b16 %v56, %v54
    %v67 = vpack.c.b16 %v57, %v55
    %v68 = vpack.c.b16 %v60, %v58
    %v69 = vpack.c.b16 %v61, %v59
    %v70 = vpack.c.b16 %v62, %v62
    %v71 = vpack.c.b16 %v63, %v63
    %vm78 = vcmask 408576
    %v80 = vsel %vm78, %v23, 0
    %vm82 = vcmask 1040384
    %v84 = vsel %vm82, %v70, 0
    %v87 = vsel %vm82, %v71, 0
    %89 = vmatprep.subr.bf16.mxu0 0
    %90 = vmatpush1.bf16.msra.mxu0 0
    %91 = vmatprep.subr.bf16.mxu0 0
    %92 = vmatpush1.bf16.msra.mxu0 0
    %93 = vmatprep.subr.bf16.mxu0 0
    %94 = vmatpush1.bf16.msra.mxu0 0
    %95 = vmatprep.subr.bf16.mxu0 0
    %96 = vmatpush1.bf16.msra.mxu0 0
    %97 = vmatprep.subr.bf16.mxu0 %v87
    %98 = vmatpush1.bf16.msra.mxu0 %v84
    %99 = vmatprep.subr.bf16.mxu0 %v69
    %100 = vmatpush1.bf16.msra.mxu0 %v68
    %101 = vmatprep.subr.bf16.mxu0 %v67
    %102 = vmatpush1.bf16.msra.mxu0 %v66
    %103 = vmatprep.subr.bf16.mxu0 %v65
    %104 = vmatpush1.bf16.msra.mxu0 %v64
    %105 = vmatprep.subr.bf16.mxu0 0
    %106 = vmatpush2.bf16.msra.mxu0 0
    %107 = vmatprep.subr.bf16.mxu0 0
    %108 = vmatpush2.bf16.msra.mxu0 0
    %109 = vmatprep.subr.bf16.mxu0 0
    %110 = vmatpush2.bf16.msra.mxu0 0
    %111 = vmatprep.subr.bf16.mxu0 0
    %112 = vmatpush2.bf16.msra.mxu0 0
    %113 = vmatprep.subr.bf16.mxu0 0
    %114 = vmatpush2.bf16.msra.mxu0 0
    %115 = vmatprep.subr.bf16.mxu0 0
    %116 = vmatpush2.bf16.msra.mxu0 0
    %117 = vmatprep.subr.bf16.mxu0 0
    %118 = vmatpush2.bf16.msra.mxu0 0
    %119 = vmatprep.subr.bf16.mxu0 0
    %120 = vmatpush2.bf16.msra.mxu0 0
    %121 = vmatprep.mubr.bf16.mxu0 0
    %122 = vmatmul.mubr.bf16.gmra.mxu0 %v80
    %v123 = vpop.f32.mrf.mxu0
    %v124 = vadd.f32 %v36, %v123
    %v125 = vpop.f32.mrf.mxu0
    %v126 = vadd.f32 %v40, %v125
    %v127 = vpop.f32.mrf.mxu0
    %v128 = vpop.f32.mrf.mxu0
    %129 = vdwg.mxu0
    %v130 = vmax.f32 %v124, 0.0
    %v131 = vmax.f32 %v126, 0.0
    %v132 = vpack.c.bf16 %v130, %v130
    %v133 = vpack.c.bf16 %v131, %v131
    %v134 = vld [vmem:[%s3] sm:$0xff]
    %v135 = vld [vmem:[%s3 + $0x8] sm:$0xff]
    %v136 = vld [vmem:[%s3 + $0x10] sm:$0xff]
    %v137 = vld [vmem:[%s3 + $0x18] sm:$0xff]
    %v138 = vld [vmem:[%s3 + $0x20] sm:$0xff]
    %v139 = vld [vmem:[%s3 + $0x28] sm:$0xff]
    %v140 = vld [vmem:[%s3 + $0x30] sm:$0xff]
    %v141 = vld [vmem:[%s3 + $0x38] sm:$0xff]
    %v142 = vld [vmem:[%s3 + $0x40] sm:$0xff]
    %v143 = vld [vmem:[%s3 + $0x48] sm:$0xff]
    %v144 = vld [vmem:[%s3 + $0x50] sm:$0xff]
    %v145 = vld [vmem:[%s3 + $0x58] sm:$0xff]
    %v146 = vld [vmem:[%s3 + $0x60] sm:$0xff]
    %v147 = vld [vmem:[%s3 + $0x68] sm:$0xff]
    %v148 = vld [vmem:[%s3 + $0x70] sm:$0xff]
    %v149 = vld [vmem:[%s3 + $0x78] sm:$0xff]
    %v150 = vld [vmem:[%s3 + $0x80] sm:$0xff]
    %v151 = vld [vmem:[%s3 + $0x88] sm:$0xff]
    %v152 = vld [vmem:[%s3 + $0x90] sm:$0xff]
    %v153 = vld [vmem:[%s3 + $0x98] sm:$0xff]
    %v154 = vld [vmem:[%s3 + $0xa0] sm:$0xff]
    %v155 = vld [vmem:[%s3 + $0xa8] sm:$0xff]
    %v156 = vld [vmem:[%s3 + $0xb0] sm:$0xff]
    %v157 = vld [vmem:[%s3 + $0xb8] sm:$0xff]
    %v158 = vld [vmem:[%s3 + $0xc0] sm:$0xff]
    %v159 = vld [vmem:[%s3 + $0xc8] sm:$0xff]
    %v160 = vld [vmem:[%s3 + $0xd0] sm:$0xff]
    %v161 = vld [vmem:[%s3 + $0xd8] sm:$0xff]
    %v162 = vld [vmem:[%s3 + $0xe0] sm:$0xff]
    %v163 = vld [vmem:[%s3 + $0xe8] sm:$0xff]
    %v164 = vld [vmem:[%s3 + $0xf0] sm:$0xff]
    %v165 = vld [vmem:[%s3 + $0xf8] sm:$0xff]
    %v166 = vld [vmem:[%s3 + $0x100] sm:$0xff]
    %v167 = vld [vmem:[%s3 + $0x108] sm:$0xff]
    %v168 = vld [vmem:[%s3 + $0x110] sm:$0xff]
    %v169 = vld [vmem:[%s3 + $0x118] sm:$0xff]
    %v170 = vld [vmem:[%s3 + $0x120] sm:$0xff]
    %v171 = vld [vmem:[%s3 + $0x128] sm:$0xff]
    %v172 = vld [vmem:[%s3 + $0x130] sm:$0xff]
    %v173 = vld [vmem:[%s3 + $0x138] sm:$0xff]
    %v174 = vld [vmem:[%s3 + $0x140] sm:$0xff]
    %v175 = vld [vmem:[%s3 + $0x148] sm:$0xff]
    %v176 = vld [vmem:[%s3 + $0x150] sm:$0xff]
    %v177 = vld [vmem:[%s3 + $0x158] sm:$0xff]
    %v178 = vld [vmem:[%s3 + $0x160] sm:$0xff]
    %v179 = vld [vmem:[%s3 + $0x168] sm:$0xff]
    %v180 = vld [vmem:[%s3 + $0x170] sm:$0xff]
    %v181 = vld [vmem:[%s3 + $0x178] sm:$0xff]
    %v182 = vld [vmem:[%s3 + $0x180] sm:$0xff]
    %v183 = vld [vmem:[%s3 + $0x188] sm:$0xff]
    %v184 = vld [vmem:[%s3 + $0x190] sm:$0xff]
    %v185 = vld [vmem:[%s3 + $0x198] sm:$0xff]
    %v186 = vld [vmem:[%s3 + $0x1a0] sm:$0xff]
    %v187 = vld [vmem:[%s3 + $0x1a8] sm:$0xff]
    %v188 = vld [vmem:[%s3 + $0x1b0] sm:$0xff]
    %v189 = vld [vmem:[%s3 + $0x1b8] sm:$0xff]
    %v190 = vld [vmem:[%s3 + $0x1c0] sm:$0xff]
    %v191 = vld [vmem:[%s3 + $0x1c8] sm:$0xff]
    %v192 = vld [vmem:[%s3 + $0x1d0] sm:$0xff]
    %v193 = vld [vmem:[%s3 + $0x1d8] sm:$0xff]
    %v194 = vld [vmem:[%s3 + $0x1e0] sm:$0xff]
    %v195 = vld [vmem:[%s3 + $0x1e8] sm:$0xff]
    %v196 = vld [vmem:[%s3 + $0x1f0] sm:$0xff]
    %v197 = vld [vmem:[%s3 + $0x1f8] sm:$0xff]
    %v198 = vld [vmem:[%s4] sm:$0xf]
    %v200 = vlaneseq
    %v201 = vshrl.u32 %v200, 7
    %v202 = vsub.s32 0, %v201
    %v203 = vrot.slane %v198, %v202
    %v204 = vlaneseq
    %v205 = vshrl.u32 %v204, 7
    %v206 = vsub.s32 1, %v205
    %v207 = vrot.slane %v198, %v206
    %v208 = vlaneseq
    %v209 = vshrl.u32 %v208, 7
    %v210 = vsub.s32 2, %v209
    %v211 = vrot.slane %v198, %v210
    %v212 = vlaneseq
    %v213 = vshrl.u32 %v212, 7
    %v214 = vsub.s32 3, %v213
    %v215 = vrot.slane %v198, %v214
    %v284 = vunpack.c.l.b16 %v134
    %v285 = vunpack.c.h.b16 %v134
    %v286 = vunpack.c.l.b16 %v135
    %v287 = vunpack.c.h.b16 %v135
    %v288 = vunpack.c.l.b16 %v136
    %v289 = vunpack.c.h.b16 %v136
    %v290 = vunpack.c.l.b16 %v137
    %v291 = vunpack.c.h.b16 %v137
    %v292 = vunpack.c.l.b16 %v138
    %v293 = vunpack.c.h.b16 %v138
    %v294 = vunpack.c.l.b16 %v139
    %v295 = vunpack.c.h.b16 %v139
    %v296 = vunpack.c.l.b16 %v140
    %v297 = vunpack.c.h.b16 %v140
    %v298 = vunpack.c.l.b16 %v141
    %v299 = vunpack.c.h.b16 %v141
    %v300 = vunpack.c.l.b16 %v142
    %v301 = vunpack.c.h.b16 %v142
    %v302 = vunpack.c.l.b16 %v143
    %v303 = vunpack.c.h.b16 %v143
    %v304 = vunpack.c.l.b16 %v144
    %v305 = vunpack.c.h.b16 %v144
    %v306 = vunpack.c.l.b16 %v145
    %v307 = vunpack.c.h.b16 %v145
    %v308 = vunpack.c.l.b16 %v146
    %v309 = vunpack.c.h.b16 %v146
    %v310 = vunpack.c.l.b16 %v147
    %v311 = vunpack.c.h.b16 %v147
    %v312 = vunpack.c.l.b16 %v148
    %v313 = vunpack.c.h.b16 %v148
    %v314 = vunpack.c.l.b16 %v149
    %v315 = vunpack.c.h.b16 %v149
    %v316 = vunpack.c.l.b16 %v150
    %v317 = vunpack.c.h.b16 %v150
    %v318 = vunpack.c.l.b16 %v151
    %v319 = vunpack.c.h.b16 %v151
    %v320 = vunpack.c.l.b16 %v152
    %v321 = vunpack.c.h.b16 %v152
    %v322 = vunpack.c.l.b16 %v153
    %v323 = vunpack.c.h.b16 %v153
    %v324 = vunpack.c.l.b16 %v154
    %v325 = vunpack.c.h.b16 %v154
    %v326 = vunpack.c.l.b16 %v155
    %v327 = vunpack.c.h.b16 %v155
    %v328 = vunpack.c.l.b16 %v156
    %v329 = vunpack.c.h.b16 %v156
    %v330 = vunpack.c.l.b16 %v157
    %v331 = vunpack.c.h.b16 %v157
    %v332 = vunpack.c.l.b16 %v158
    %v333 = vunpack.c.h.b16 %v158
    %v334 = vunpack.c.l.b16 %v159
    %v335 = vunpack.c.h.b16 %v159
    %v336 = vunpack.c.l.b16 %v160
    %v337 = vunpack.c.h.b16 %v160
    %v338 = vunpack.c.l.b16 %v161
    %v339 = vunpack.c.h.b16 %v161
    %v340 = vunpack.c.l.b16 %v162
    %v341 = vunpack.c.h.b16 %v162
    %v342 = vunpack.c.l.b16 %v163
    %v343 = vunpack.c.h.b16 %v163
    %v344 = vunpack.c.l.b16 %v164
    %v345 = vunpack.c.h.b16 %v164
    %v346 = vunpack.c.l.b16 %v165
    %v347 = vunpack.c.h.b16 %v165
    %v348 = vunpack.c.l.b16 %v166
    %v349 = vunpack.c.h.b16 %v166
    %v350 = vunpack.c.l.b16 %v167
    %v351 = vunpack.c.h.b16 %v167
    %v352 = vunpack.c.l.b16 %v168
    %v353 = vunpack.c.h.b16 %v168
    %v354 = vunpack.c.l.b16 %v169
    %v355 = vunpack.c.h.b16 %v169
    %v356 = vunpack.c.l.b16 %v170
    %v357 = vunpack.c.h.b16 %v170
    %v358 = vunpack.c.l.b16 %v171
    %v359 = vunpack.c.h.b16 %v171
    %v360 = vunpack.c.l.b16 %v172
    %v361 = vunpack.c.h.b16 %v172
    %v362 = vunpack.c.l.b16 %v173
    %v363 = vunpack.c.h.b16 %v173
    %v364 = vunpack.c.l.b16 %v174
    %v365 = vunpack.c.h.b16 %v174
    %v366 = vunpack.c.l.b16 %v175
    %v367 = vunpack.c.h.b16 %v175
    %v368 = vunpack.c.l.b16 %v176
    %v369 = vunpack.c.h.b16 %v176
    %v370 = vunpack.c.l.b16 %v177
    %v371 = vunpack.c.h.b16 %v177
    %v372 = vunpack.c.l.b16 %v178
    %v373 = vunpack.c.h.b16 %v178
    %v374 = vunpack.c.l.b16 %v179
    %v375 = vunpack.c.h.b16 %v179
    %v376 = vunpack.c.l.b16 %v180
    %v377 = vunpack.c.h.b16 %v180
    %v378 = vunpack.c.l.b16 %v181
    %v379 = vunpack.c.h.b16 %v181
    %v380 = vunpack.c.l.b16 %v182
    %v381 = vunpack.c.h.b16 %v182
    %v382 = vunpack.c.l.b16 %v183
    %v383 = vunpack.c.h.b16 %v183
    %v384 = vunpack.c.l.b16 %v184
    %v385 = vunpack.c.h.b16 %v184
    %v386 = vunpack.c.l.b16 %v185
    %v387 = vunpack.c.h.b16 %v185
    %v388 = vunpack.c.l.b16 %v186
    %v389 = vunpack.c.h.b16 %v186
    %v390 = vunpack.c.l.b16 %v187
    %v391 = vunpack.c.h.b16 %v187
    %v392 = vunpack.c.l.b16 %v188
    %v393 = vunpack.c.h.b16 %v188
    %v394 = vunpack.c.l.b16 %v189
    %v395 = vunpack.c.h.b16 %v189
    %v396 = vunpack.c.l.b16 %v190
    %v397 = vunpack.c.h.b16 %v190
    %v398 = vunpack.c.l.b16 %v191
    %v399 = vunpack.c.h.b16 %v191
    %v400 = vunpack.c.l.b16 %v192
    %v401 = vunpack.c.h.b16 %v192
    %v402 = vunpack.c.l.b16 %v193
    %v403 = vunpack.c.h.b16 %v193
    %v404 = vunpack.c.l.b16 %v194
    %v405 = vunpack.c.h.b16 %v194
    %v406 = vunpack.c.l.b16 %v195
    %v407 = vunpack.c.h.b16 %v195
    %v408 = vunpack.c.l.b16 %v196
    %v409 = vunpack.c.h.b16 %v196
    %v410 = vunpack.c.l.b16 %v197
    %v411 = vunpack.c.h.b16 %v197
    %v412 = vpack.c.b16 %v288, %v284
    %v413 = vpack.c.b16 %v289, %v285
    %v414 = vpack.c.b16 %v290, %v286
    %v415 = vpack.c.b16 %v291, %v287
    %v416 = vpack.c.b16 %v296, %v292
    %v417 = vpack.c.b16 %v297, %v293
    %v418 = vpack.c.b16 %v298, %v294
    %v419 = vpack.c.b16 %v299, %v295
    %v420 = vpack.c.b16 %v304, %v300
    %v421 = vpack.c.b16 %v305, %v301
    %v422 = vpack.c.b16 %v306, %v302
    %v423 = vpack.c.b16 %v307, %v303
    %v424 = vpack.c.b16 %v312, %v308
    %v425 = vpack.c.b16 %v313, %v309
    %v426 = vpack.c.b16 %v314, %v310
    %v427 = vpack.c.b16 %v315, %v311
    %v428 = vpack.c.b16 %v320, %v316
    %v429 = vpack.c.b16 %v321, %v317
    %v430 = vpack.c.b16 %v322, %v318
    %v431 = vpack.c.b16 %v323, %v319
    %v432 = vpack.c.b16 %v328, %v324
    %v433 = vpack.c.b16 %v329, %v325
    %v434 = vpack.c.b16 %v330, %v326
    %v435 = vpack.c.b16 %v331, %v327
    %v436 = vpack.c.b16 %v336, %v332
    %v437 = vpack.c.b16 %v337, %v333
    %v438 = vpack.c.b16 %v338, %v334
    %v439 = vpack.c.b16 %v339, %v335
    %v440 = vpack.c.b16 %v344, %v340
    %v441 = vpack.c.b16 %v345, %v341
    %v442 = vpack.c.b16 %v346, %v342
    %v443 = vpack.c.b16 %v347, %v343
    %v444 = vpack.c.b16 %v352, %v348
    %v445 = vpack.c.b16 %v353, %v349
    %v446 = vpack.c.b16 %v354, %v350
    %v447 = vpack.c.b16 %v355, %v351
    %v448 = vpack.c.b16 %v360, %v356
    %v449 = vpack.c.b16 %v361, %v357
    %v450 = vpack.c.b16 %v362, %v358
    %v451 = vpack.c.b16 %v363, %v359
    %v452 = vpack.c.b16 %v368, %v364
    %v453 = vpack.c.b16 %v369, %v365
    %v454 = vpack.c.b16 %v370, %v366
    %v455 = vpack.c.b16 %v371, %v367
    %v456 = vpack.c.b16 %v376, %v372
    %v457 = vpack.c.b16 %v377, %v373
    %v458 = vpack.c.b16 %v378, %v374
    %v459 = vpack.c.b16 %v379, %v375
    %v460 = vpack.c.b16 %v384, %v380
    %v461 = vpack.c.b16 %v385, %v381
    %v462 = vpack.c.b16 %v386, %v382
    %v463 = vpack.c.b16 %v387, %v383
    %v464 = vpack.c.b16 %v392, %v388
    %v465 = vpack.c.b16 %v393, %v389
    %v466 = vpack.c.b16 %v394, %v390
    %v467 = vpack.c.b16 %v395, %v391
    %v468 = vpack.c.b16 %v400, %v396
    %v469 = vpack.c.b16 %v401, %v397
    %v470 = vpack.c.b16 %v402, %v398
    %v471 = vpack.c.b16 %v403, %v399
    %v472 = vpack.c.b16 %v408, %v404
    %v473 = vpack.c.b16 %v409, %v405
    %v474 = vpack.c.b16 %v410, %v406
    %v475 = vpack.c.b16 %v411, %v407
    %540 = vmatprep.subr.bf16.mxu0 %v441
    %541 = vmatpush1.bf16.msra.mxu0 %v440
    %542 = vmatprep.subr.bf16.mxu0 %v437
    %543 = vmatpush1.bf16.msra.mxu0 %v436
    %544 = vmatprep.subr.bf16.mxu0 %v433
    %545 = vmatpush1.bf16.msra.mxu0 %v432
    %546 = vmatprep.subr.bf16.mxu0 %v429
    %547 = vmatpush1.bf16.msra.mxu0 %v428
    %548 = vmatprep.subr.bf16.mxu0 %v425
    %549 = vmatpush1.bf16.msra.mxu0 %v424
    %550 = vmatprep.subr.bf16.mxu0 %v421
    %551 = vmatpush1.bf16.msra.mxu0 %v420
    %552 = vmatprep.subr.bf16.mxu0 %v417
    %553 = vmatpush1.bf16.msra.mxu0 %v416
    %554 = vmatprep.subr.bf16.mxu0 %v413
    %555 = vmatpush1.bf16.msra.mxu0 %v412
    %556 = vmatprep.subr.bf16.mxu0 %v473
    %557 = vmatpush2.bf16.msra.mxu0 %v472
    %558 = vmatprep.subr.bf16.mxu0 %v469
    %559 = vmatpush2.bf16.msra.mxu0 %v468
    %560 = vmatprep.subr.bf16.mxu0 %v465
    %561 = vmatpush2.bf16.msra.mxu0 %v464
    %562 = vmatprep.subr.bf16.mxu0 %v461
    %563 = vmatpush2.bf16.msra.mxu0 %v460
    %564 = vmatprep.subr.bf16.mxu0 %v457
    %565 = vmatpush2.bf16.msra.mxu0 %v456
    %566 = vmatprep.subr.bf16.mxu0 %v453
    %567 = vmatpush2.bf16.msra.mxu0 %v452
    %568 = vmatprep.subr.bf16.mxu0 %v449
    %569 = vmatpush2.bf16.msra.mxu0 %v448
    %570 = vmatprep.subr.bf16.mxu0 %v445
    %571 = vmatpush2.bf16.msra.mxu0 %v444
    %572 = vmatprep.mubr.bf16.mxu0 %v133
    %573 = vmatmul.mubr.bf16.gmra.mxu0 %v132
    %v574 = vpop.f32.mrf.mxu0
    %v575 = vadd.f32 %v203, %v574
    %v576 = vpop.f32.mrf.mxu0
    %v577 = vadd.f32 %v207, %v576
    %v578 = vpop.f32.mrf.mxu0
    %v579 = vpop.f32.mrf.mxu0
    %580 = vdwg.mxu0
    %581 = vmatprep.subr.bf16.mxu0 %v443
    %582 = vmatpush1.bf16.msra.mxu0 %v442
    %583 = vmatprep.subr.bf16.mxu0 %v439
    %584 = vmatpush1.bf16.msra.mxu0 %v438
    %585 = vmatprep.subr.bf16.mxu0 %v435
    %586 = vmatpush1.bf16.msra.mxu0 %v434
    %587 = vmatprep.subr.bf16.mxu0 %v431
    %588 = vmatpush1.bf16.msra.mxu0 %v430
    %589 = vmatprep.subr.bf16.mxu0 %v427
    %590 = vmatpush1.bf16.msra.mxu0 %v426
    %591 = vmatprep.subr.bf16.mxu0 %v423
    %592 = vmatpush1.bf16.msra.mxu0 %v422
    %593 = vmatprep.subr.bf16.mxu0 %v419
    %594 = vmatpush1.bf16.msra.mxu0 %v418
    %595 = vmatprep.subr.bf16.mxu0 %v415
    %596 = vmatpush1.bf16.msra.mxu0 %v414
    %597 = vmatprep.subr.bf16.mxu0 %v475
    %598 = vmatpush2.bf16.msra.mxu0 %v474
    %599 = vmatprep.subr.bf16.mxu0 %v471
    %600 = vmatpush2.bf16.msra.mxu0 %v470
    %601 = vmatprep.subr.bf16.mxu0 %v467
    %602 = vmatpush2.bf16.msra.mxu0 %v466
    %603 = vmatprep.subr.bf16.mxu0 %v463
    %604 = vmatpush2.bf16.msra.mxu0 %v462
    %605 = vmatprep.subr.bf16.mxu0 %v459
    %606 = vmatpush2.bf16.msra.mxu0 %v458
    %607 = vmatprep.subr.bf16.mxu0 %v455
    %608 = vmatpush2.bf16.msra.mxu0 %v454
    %609 = vmatprep.subr.bf16.mxu0 %v451
    %610 = vmatpush2.bf16.msra.mxu0 %v450
    %611 = vmatprep.subr.bf16.mxu0 %v447
    %612 = vmatpush2.bf16.msra.mxu0 %v446
    %613 = vmatprep.mubr.bf16.mxu0 %v133
    %614 = vmatmul.mubr.bf16.gmra.mxu0 %v132
    %v615 = vpop.f32.mrf.mxu0
    %v616 = vadd.f32 %v211, %v615
    %v617 = vpop.f32.mrf.mxu0
    %v618 = vadd.f32 %v215, %v617
    %v619 = vpop.f32.mrf.mxu0
    %v620 = vpop.f32.mrf.mxu0
    %621 = vdwg.mxu0
    %v622 = vsub.f32 0.0, %v575
    %v623 = vsub.f32 0.0, %v577
    %v624 = vsub.f32 0.0, %v616
    %v625 = vsub.f32 0.0, %v618
    %v626 = vmul.f32 %v622, 1.442695
    %v627 = vpow.pop %v626
    %v628 = vmul.f32 %v623, 1.442695
    %v629 = vpow.pop %v628
    %v630 = vmul.f32 %v624, 1.442695
    %v631 = vpow.pop %v630
    %v632 = vmul.f32 %v625, 1.442695
    %v633 = vpow.pop %v632
    %v634 = vadd.f32 %v627, 1.0
    %v635 = vadd.f32 %v629, 1.0
    %v636 = vadd.f32 %v631, 1.0
    %v637 = vadd.f32 %v633, 1.0
    %v638 = vrcp.pop %v634
    %v639 = vrcp.pop %v635
    %v640 = vrcp.pop %v636
    %v641 = vrcp.pop %v637
    %642 = vst [vmem:[#allocation2] sm:$0xff] %v638
    %643 = vst [vmem:[#allocation2 + $0x8] sm:$0xff] %v639
    %644 = vst [vmem:[#allocation2 + $0x10] sm:$0xff] %v640
    %vm645 = vcmask 130048
    %646 = vst.msk [vmem:[#allocation2 + $0x18] sm:$0xff] %vm645, %v641
    // Predicated region
    $region22: #{object_decoder_forward.1} parent=1 // pred_check
      _
    $region23: #{object_decoder_forward.1} parent=1 // pred_check_branch
      %648 = sbr.rel (0) target = $region25
    $region24: #{object_decoder_forward.1} parent=1 // pred_region
      %s650 = ssub.s32 512, 512
      %651 = vsyncadd [#allocation3], %s650
      %s653 = sshll.u32 [#allocation2], 4
      %s654 = int_to_ptr.vmem [resolvable:$true] %s653
      %656 = dma.vmem_to_hbm [thread:$0]  %s654, 512, %s5, [#allocation3]
    $region25: #{object_decoder_forward.1} parent=1 // pred_fallthru
      _
    // Predicated region
    $region26: #{object_decoder_forward.1} parent=1 // pred_check
      _
    $region27: #{object_decoder_forward.1} parent=1 // pred_check_branch
      %658 = sbr.rel (0) target = $region29
    $region28: #{object_decoder_forward.1} parent=1 // pred_region
      %659 = dma.done [#allocation3], 512
    $region29: #{object_decoder_forward.1} parent=1 // pred_fallthru
      _
    %660 = vsyncpa [#allocation3], 1

</llo_original>
